<compile_context>
chip_gen: v6e
topology: v6e:2x2x1
jax: 0.10.0
libtpu: 0.0.40
codegen_flags: <defaults>
</compile_context>

<pallas_src>
import functools
import math

import jax
import jax.numpy as jnp
from jax.experimental import pallas as pl
from jax.experimental.pallas import tpu as pltpu


def _robust_mse_kernel(t_ref, p_ref, part_ref, sq_acc, exp_acc, rel_acc, *,
                       total_rows, tile_rows, tiles_per_shard, approx_recip):
    s = pl.program_id(0)   # shard axis ("parallel": TC split on megacore parts)
    j = pl.program_id(1)   # streaming reduction axis ("arbitrary")

    @pl.when(j == 0)
    def _():
        sq_acc[...] = jnp.zeros_like(sq_acc)
        exp_acc[...] = jnp.zeros_like(exp_acc)
        rel_acc[...] = jnp.zeros_like(rel_acc)

    t = t_ref[...].astype(jnp.float32)
    p = p_ref[...].astype(jnp.float32)
    n = t.shape[-1]
    row_start = (s * tiles_per_shard + j) * tile_rows

    def elementwise():
        diff = t - p
        sq = diff * diff
        # exp(1 + |x|) == e * exp(|x|): '+1' hoisted out of the per-element
        # path; the e factor is applied once at finalize.
        ex = jnp.exp(jnp.abs((t - 100.0) * (1.0 / 15.0)))
        if approx_recip:
            # EUP-only reciprocal (skips Newton-Raphson VALU refinement).
            # ~1e-3 rel error; targets==0 edge cases differ from exact divide.
            rel = jnp.abs(diff) * pl.reciprocal(t, approx=True)
        else:
            rel = jnp.abs(diff) / t
        return sq, ex, rel

    def accumulate(sq, ex, rel):
        # Whole-(8, N) VALU adds only; the cross-sublane XLU reduce is deferred
        # to the finalize step.
        sq_acc[...] += sq.reshape(tile_rows // 8, 8, n).sum(axis=0)
        exp_acc[...] += ex.reshape(tile_rows // 8, 8, n).sum(axis=0)
        rel_acc[...] += rel.reshape(tile_rows // 8, 8, n).sum(axis=0)

    # Fast path: fully in-bounds interior tiles -> no iota, no compares, no
    # selects, no tile-sized int32 temporary.
    @pl.when(row_start + tile_rows <= total_rows)
    def _():
        sq, ex, rel = elementwise()
        accumulate(sq, ex, rel)

    # Tail path: the ragged last tile and any duplicated (clamped) blocks from
    # the shard decomposition get row-masked here. jnp.where is a select, so
    # garbage in padded rows never leaks into the sums.
    @pl.when(row_start + tile_rows > total_rows)
    def _():
        sq, ex, rel = elementwise()
        local_row = jax.lax.broadcasted_iota(jnp.int32, (tile_rows, n), 0)
        valid = (row_start + local_row) < total_rows
        accumulate(jnp.where(valid, sq, 0.0),
                   jnp.where(valid, ex, 0.0),
                   jnp.where(valid, rel, 0.0))

    @pl.when(j == pl.num_programs(1) - 1)
    def _():
        sq_tot = jnp.sum(sq_acc[...])
        exp_tot = jnp.sum(exp_acc[...]) * math.e   # restore the hoisted '+1'
        rel_tot = jnp.sum(rel_acc[...])
        # Lane-dense partials block: lane 0 = sum((t-p)^2), lane 1 =
        # sum(exp(1+std)), lane 2 = sum(|t-p|/t); the wrapper combines shards
        # and applies the scalar formula.
        lane = jax.lax.broadcasted_iota(jnp.int32, part_ref.shape, 2)
        part_ref[...] = jnp.where(
            lane == 0, sq_tot,
            jnp.where(lane == 1, exp_tot,
                      jnp.where(lane == 2, rel_tot, 0.0))).astype(part_ref.dtype)


def _device_kind():
    try:
        return jax.devices()[0].device_kind.lower()
    except Exception:
        return ""


def outlier_robust_mse(targets, pred, lmbd=0.5, *, tile_rows=None,
                       num_shards=None, approx_recip=False):
    """Pallas implementation of OutlierRobustMSE.forward(targets, pred).

    approx_recip=True swaps the exact |t-p|/t divide for an EUP-only
    approximate reciprocal (~1e-3 rel error, different behavior at targets==0);
    worthwhile on v7x or with bf16 inputs when the kernel turns compute-bound.
    """
    del lmbd  # present in the module __init__ but unused by forward()
    assert targets.shape == pred.shape and targets.ndim == 2
    M, N = targets.shape
    itemsize = jnp.dtype(targets.dtype).itemsize

    # Sublane packing multiple for the input dtype (8 f32, 16 bf16, 32 int8).
    sub = max(8, 32 // itemsize)

    # ---- Generation-aware defaults --------------------------------------
    kind = _device_kind()
    is_v7 = "v7" in kind
    is_v6 = "v6" in kind
    # Only multi-TensorCore parts benefit from the shard ("parallel") axis; on
    # single-TC v5e/v6e it is a serial loop that costs a duplicated clamped
    # HBM read plus an extra finalize for zero gain.
    megacore = is_v7 or ("v4" in kind) or ("v5p" in kind)
    if num_shards is None:
        num_shards = 2 if megacore else 1
    num_shards = max(1, int(num_shards))

    # Per-input block target: bigger blocks on faster-HBM parts so the ~0.35us
    # fixed per-step overhead stays a small fraction of each step's DMA time.
    if is_v7:
        target_block_bytes = 8 * 1024 * 1024   # 2 in x 2 buf x 8 MiB = 32 MiB
        vmem_cap = 48 * 1024 * 1024            # < 64 MiB physical: headroom
    elif is_v6:
        target_block_bytes = 4 * 1024 * 1024   # 16 MiB of input buffers
        vmem_cap = 64 * 1024 * 1024
    else:
        target_block_bytes = 2 * 1024 * 1024
        vmem_cap = 64 * 1024 * 1024

    # ---- Tile-size selection ---------------------------------------------
    if tile_rows is None:
        by_vmem = max(sub, (target_block_bytes // max(1, N * itemsize)) // sub * sub)
        by_rows = ((pl.cdiv(M, num_shards) + sub - 1) // sub) * sub
        tile_rows = max(sub, min(by_vmem, by_rows))
    assert tile_rows % sub == 0, (
        f"tile_rows={tile_rows} must be a multiple of the dtype sublane "
        f"multiple ({sub})")

    total_tiles = pl.cdiv(M, tile_rows)
    num_shards = max(1, min(num_shards, total_tiles))
    tiles_per_shard = pl.cdiv(total_tiles, num_shards)

    # Explicit VMEM budget: 2 inputs x 2 pipeline buffers x block + accumulator
    # scratch + output block, with ~2x slack, capped below physical on v7x.
    block_bytes = tile_rows * N * itemsize
    vmem_need = 2 * 2 * block_bytes + 3 * 8 * N * 4 + 2 * 8 * 128 * 4
    vmem_limit = int(min(vmem_cap, max(2 * vmem_need, 16 * 1024 * 1024)))

    kernel = functools.partial(
        _robust_mse_kernel, total_rows=M, tile_rows=tile_rows,
        tiles_per_shard=tiles_per_shard, approx_recip=approx_recip)

    def in_map(s, j):
        # Clamp so a shard whose tile range over-runs the array just re-reads
        # the last block; the in-kernel tail path zeroes its contribution.
        return (jnp.minimum(s * tiles_per_shard + j, total_tiles - 1), 0)

    # TODO(synk): if xprof on v7x shows one TC idle, switch the shard axis to
    # pltpu.CORE_PARALLEL (or an explicit pl.core_map split); and if DMA stays
    # exposed at step boundaries after the block-size bump, sweep
    # pipeline_mode=pl.Buffered(3) on the two input BlockSpecs.
    parts = pl.pallas_call(
        kernel,
        out_shape=jax.ShapeDtypeStruct((num_shards, 8, 128), jnp.float32),
        grid=(num_shards, tiles_per_shard),
        in_specs=[
            pl.BlockSpec((tile_rows, N), in_map),
            pl.BlockSpec((tile_rows, N), in_map),
        ],
        out_specs=pl.BlockSpec((1, 8, 128), lambda s, j: (s, 0, 0)),
        scratch_shapes=[
            pltpu.VMEM((8, N), jnp.float32),  # sum of (t - p)^2
            pltpu.VMEM((8, N), jnp.float32),  # sum of exp(|t - 100| / 15)
            pltpu.VMEM((8, N), jnp.float32),  # sum of |t - p| / t
        ],
        compiler_params=pltpu.CompilerParams(
            dimension_semantics=("parallel", "arbitrary"),
            vmem_limit_bytes=vmem_limit,
        ),
    )(targets, pred)

    # Combine per-shard partial sums and apply the final scalar formula.
    sq_tot = jnp.sum(parts[:, 0, 0])
    exp_tot = jnp.sum(parts[:, 0, 1])
    rel_tot = jnp.sum(parts[:, 0, 2])
    base_mse = sq_tot / jnp.float32(M * N)
    penalty = exp_tot * (1.0 - 1.0 / rel_tot)
    return base_mse + penalty


def _reference(targets, pred):
    """Pure-JAX reference mirroring the PyTorch forward exactly."""
    targets_standardized = jnp.abs((targets - 100.0) / 15.0)
    base_mse = jnp.mean((targets - pred) ** 2)
    penalty = jnp.sum(jnp.exp(1.0 + targets_standardized)) * (
        1.0 - 1.0 / jnp.sum(jnp.abs(targets - pred) / targets)
    )
    return base_mse + penalty


if __name__ == "__main__":
    k_t, k_p, k_t2, k_p2 = jax.random.split(jax.random.PRNGKey(0), 4)

    # targets ~ N(100, 15): IQ-like scores (also keeps targets away from zero,
    # matching the implicit assumption of the |t - p| / t term).
    targets = 100.0 + 15.0 * jax.random.normal(k_t, (16, 128), dtype=jnp.float32)
    pred = targets + jax.random.normal(k_p, (16, 128), dtype=jnp.float32)

    loss = outlier_robust_mse(targets, pred)
    jax.block_until_ready(loss)
    ref = _reference(targets, pred)
    assert jnp.allclose(loss, ref, rtol=1e-4, atol=1e-3), (loss, ref)

    # Ragged row count: exercises the cdiv grid, shard clamping and the masked
    # tail path, while interior tiles still take the unmasked fast path.
    targets2 = 100.0 + 15.0 * jax.random.normal(k_t2, (50, 128), dtype=jnp.float32)
    pred2 = targets2 + jax.random.normal(k_p2, (50, 128), dtype=jnp.float32)
    loss2 = outlier_robust_mse(targets2, pred2)
    jax.block_until_ready(loss2)
    ref2 = _reference(targets2, pred2)
    assert jnp.allclose(loss2, ref2, rtol=1e-4, atol=1e-3), (loss2, ref2)

    # Optional approximate-reciprocal path (v7x / bf16 compute-bound relief);
    # looser tolerance since the |t-p|/t denominator picks up ~1e-3 rel error.
    loss3 = outlier_robust_mse(targets, pred, approx_recip=True)
    jax.block_until_ready(loss3)
    assert jnp.allclose(loss3, ref, rtol=1e-2, atol=1e-2), (loss3, ref)

    print("KERNEL_OK")
</pallas_src>

<mosaic_0001>
module attributes {stable_mosaic.version = 11 : i64} {
  func.func @_robust_mse_kernel(%arg0: i32, %arg1: i32, %arg2: memref<16x128xf32, #tpu.memory_space<vmem>>, %arg3: memref<16x128xf32, #tpu.memory_space<vmem>>, %arg4: memref<1x8x128xf32, #tpu.memory_space<vmem>>, %arg5: memref<8x128xf32, #tpu.memory_space<vmem>>, %arg6: memref<8x128xf32, #tpu.memory_space<vmem>>, %arg7: memref<8x128xf32, #tpu.memory_space<vmem>>) attributes {dimension_semantics = [#tpu.dimension_semantics<parallel>, #tpu.dimension_semantics<arbitrary>], iteration_bounds = array<i64: 1, 1>, scalar_prefetch = 0 : i64, scratch_operands = 3 : i64, tpu.core_type = #tpu.core_type<tc>, window_params = [{transform_indices = @transform_0, window_bounds = array<i64: 16, 128>}, {transform_indices = @transform_1, window_bounds = array<i64: 16, 128>}, {transform_indices = @transform_2, window_bounds = array<i64: 1, 8, 128>}]} {
    %c0_i32 = arith.constant 0 : i32
    %0 = arith.cmpi eq, %arg1, %c0_i32 : i32
    %1 = arith.extui %0 : i1 to i32
    %c0_i32_0 = arith.constant 0 : i32
    %2 = arith.cmpi ne, %1, %c0_i32_0 : i32
    scf.if %2 {
      %cst = arith.constant 0.000000e+00 : f32
      %19 = vector.broadcast %cst : f32 to vector<8x128xf32>
      %c0_12 = arith.constant 0 : index
      %c0_13 = arith.constant 0 : index
      %20 = vector.load %arg5[%c0_12, %c0_13] : memref<8x128xf32, #tpu.memory_space<vmem>>, vector<8x128xf32>
      tpu.vector_store %arg5[%c0_12, %c0_13], %19 {strides = array<i32>} : memref<8x128xf32, #tpu.memory_space<vmem>>, vector<8x128xf32>,
      %cst_14 = arith.constant 0.000000e+00 : f32
      %21 = vector.broadcast %cst_14 : f32 to vector<8x128xf32>
      %c0_15 = arith.constant 0 : index
      %c0_16 = arith.constant 0 : index
      %22 = vector.load %arg6[%c0_15, %c0_16] : memref<8x128xf32, #tpu.memory_space<vmem>>, vector<8x128xf32>
      tpu.vector_store %arg6[%c0_15, %c0_16], %21 {strides = array<i32>} : memref<8x128xf32, #tpu.memory_space<vmem>>, vector<8x128xf32>,
      %cst_17 = arith.constant 0.000000e+00 : f32
      %23 = vector.broadcast %cst_17 : f32 to vector<8x128xf32>
      %c0_18 = arith.constant 0 : index
      %c0_19 = arith.constant 0 : index
      %24 = vector.load %arg7[%c0_18, %c0_19] : memref<8x128xf32, #tpu.memory_space<vmem>>, vector<8x128xf32>
      tpu.vector_store %arg7[%c0_18, %c0_19], %23 {strides = array<i32>} : memref<8x128xf32, #tpu.memory_space<vmem>>, vector<8x128xf32>,
    } else {
    }
    %c0 = arith.constant 0 : index
    %c0_1 = arith.constant 0 : index
    %3 = vector.load %arg2[%c0, %c0_1] : memref<16x128xf32, #tpu.memory_space<vmem>>, vector<16x128xf32>
    %c0_2 = arith.constant 0 : index
    %c0_3 = arith.constant 0 : index
    %4 = vector.load %arg3[%c0_2, %c0_3] : memref<16x128xf32, #tpu.memory_space<vmem>>, vector<16x128xf32>
    %c1_i32 = arith.constant 1 : i32
    %5 = arith.muli %arg0, %c1_i32 : i32
    %6 = arith.addi %5, %arg1 : i32
    %c16_i32 = arith.constant 16 : i32
    %7 = arith.muli %6, %c16_i32 : i32
    %c16_i32_4 = arith.constant 16 : i32
    %8 = arith.addi %7, %c16_i32_4 : i32
    %c16_i32_5 = arith.constant 16 : i32
    %9 = arith.cmpi sle, %8, %c16_i32_5 : i32
    %10 = arith.extui %9 : i1 to i32
    %c0_i32_6 = arith.constant 0 : i32
    %11 = arith.cmpi ne, %10, %c0_i32_6 : i32
    scf.if %11 {
      %19 = arith.subf %3, %4 : vector<16x128xf32>
      %20 = arith.mulf %19, %19 : vector<16x128xf32>
      %cst = arith.constant 1.000000e+02 : f32
      %21 = vector.broadcast %cst : f32 to vector<16x128xf32>
      %22 = arith.subf %3, %21 : vector<16x128xf32>
      %cst_12 = arith.constant 0.0666666701 : f32
      %23 = vector.broadcast %cst_12 : f32 to vector<16x128xf32>
      %24 = arith.mulf %22, %23 : vector<16x128xf32>
      %25 = math.absf %24 : vector<16x128xf32>
      %26 = math.exp %25 : vector<16x128xf32>
      %27 = math.absf %19 : vector<16x128xf32>
      %28 = arith.divf %27, %3 : vector<16x128xf32>
      %c0_13 = arith.constant 0 : index
      %c0_14 = arith.constant 0 : index
      %29 = vector.load %arg5[%c0_13, %c0_14] : memref<8x128xf32, #tpu.memory_space<vmem>>, vector<8x128xf32>
      %30 = vector.shape_cast %20 : vector<16x128xf32> to vector<2x8x128xf32>
      %cst_15 = arith.constant dense<0.000000e+00> : vector<8x128xf32>
      %31 = vector.multi_reduction <add>, %30, %cst_15 [0] : vector<2x8x128xf32> to vector<8x128xf32>
      %32 = arith.addf %29, %31 : vector<8x128xf32>
      %c0_16 = arith.constant 0 : index
      %c0_17 = arith.constant 0 : index
      %33 = vector.load %arg5[%c0_16, %c0_17] : memref<8x128xf32, #tpu.memory_space<vmem>>, vector<8x128xf32>
      tpu.vector_store %arg5[%c0_16, %c0_17], %32 {strides = array<i32>} : memref<8x128xf32, #tpu.memory_space<vmem>>, vector<8x128xf32>,
      %c0_18 = arith.constant 0 : index
      %c0_19 = arith.constant 0 : index
      %34 = vector.load %arg6[%c0_18, %c0_19] : memref<8x128xf32, #tpu.memory_space<vmem>>, vector<8x128xf32>
      %35 = vector.shape_cast %26 : vector<16x128xf32> to vector<2x8x128xf32>
      %cst_20 = arith.constant dense<0.000000e+00> : vector<8x128xf32>
      %36 = vector.multi_reduction <add>, %35, %cst_20 [0] : vector<2x8x128xf32> to vector<8x128xf32>
      %37 = arith.addf %34, %36 : vector<8x128xf32>
      %c0_21 = arith.constant 0 : index
      %c0_22 = arith.constant 0 : index
      %38 = vector.load %arg6[%c0_21, %c0_22] : memref<8x128xf32, #tpu.memory_space<vmem>>, vector<8x128xf32>
      tpu.vector_store %arg6[%c0_21, %c0_22], %37 {strides = array<i32>} : memref<8x128xf32, #tpu.memory_space<vmem>>, vector<8x128xf32>,
      %c0_23 = arith.constant 0 : index
      %c0_24 = arith.constant 0 : index
      %39 = vector.load %arg7[%c0_23, %c0_24] : memref<8x128xf32, #tpu.memory_space<vmem>>, vector<8x128xf32>
      %40 = vector.shape_cast %28 : vector<16x128xf32> to vector<2x8x128xf32>
      %cst_25 = arith.constant dense<0.000000e+00> : vector<8x128xf32>
      %41 = vector.multi_reduction <add>, %40, %cst_25 [0] : vector<2x8x128xf32> to vector<8x128xf32>
      %42 = arith.addf %39, %41 : vector<8x128xf32>
      %c0_26 = arith.constant 0 : index
      %c0_27 = arith.constant 0 : index
      %43 = vector.load %arg7[%c0_26, %c0_27] : memref<8x128xf32, #tpu.memory_space<vmem>>, vector<8x128xf32>
      tpu.vector_store %arg7[%c0_26, %c0_27], %42 {strides = array<i32>} : memref<8x128xf32, #tpu.memory_space<vmem>>, vector<8x128xf32>,
    } else {
    }
    %c16_i32_7 = arith.constant 16 : i32
    %12 = arith.addi %7, %c16_i32_7 : i32
    %c16_i32_8 = arith.constant 16 : i32
    %13 = arith.cmpi sgt, %12, %c16_i32_8 : i32
    %14 = arith.extui %13 : i1 to i32
    %c0_i32_9 = arith.constant 0 : i32
    %15 = arith.cmpi ne, %14, %c0_i32_9 : i32
    scf.if %15 {
      %19 = arith.subf %3, %4 : vector<16x128xf32>
      %20 = arith.mulf %19, %19 : vector<16x128xf32>
      %cst = arith.constant 1.000000e+02 : f32
      %21 = vector.broadcast %cst : f32 to vector<16x128xf32>
      %22 = arith.subf %3, %21 : vector<16x128xf32>
      %cst_12 = arith.constant 0.0666666701 : f32
      %23 = vector.broadcast %cst_12 : f32 to vector<16x128xf32>
      %24 = arith.mulf %22, %23 : vector<16x128xf32>
      %25 = math.absf %24 : vector<16x128xf32>
      %26 = math.exp %25 : vector<16x128xf32>
      %27 = math.absf %19 : vector<16x128xf32>
      %28 = arith.divf %27, %3 : vector<16x128xf32>
      %29 = tpu.iota {dimensions = array<i32: 0>} : vector<16x128xi32>
      %30 = vector.broadcast %7 : i32 to vector<16x128xi32>
      %31 = arith.addi %30, %29 : vector<16x128xi32>
      %c16_i32_13 = arith.constant 16 : i32
      %32 = vector.broadcast %c16_i32_13 : i32 to vector<16x128xi32>
      %33 = arith.cmpi slt, %31, %32 : vector<16x128xi32>
      %cst_14 = arith.constant 0.000000e+00 : f32
      %34 = vector.broadcast %cst_14 : f32 to vector<16x128xf32>
      %35 = arith.select %33, %20, %34 : vector<16x128xi1>, vector<16x128xf32>
      %cst_15 = arith.constant 0.000000e+00 : f32
      %36 = vector.broadcast %cst_15 : f32 to vector<16x128xf32>
      %37 = arith.select %33, %26, %36 : vector<16x128xi1>, vector<16x128xf32>
      %cst_16 = arith.constant 0.000000e+00 : f32
      %38 = vector.broadcast %cst_16 : f32 to vector<16x128xf32>
      %39 = arith.select %33, %28, %38 : vector<16x128xi1>, vector<16x128xf32>
      %c0_17 = arith.constant 0 : index
      %c0_18 = arith.constant 0 : index
      %40 = vector.load %arg5[%c0_17, %c0_18] : memref<8x128xf32, #tpu.memory_space<vmem>>, vector<8x128xf32>
      %41 = vector.shape_cast %35 : vector<16x128xf32> to vector<2x8x128xf32>
      %cst_19 = arith.constant dense<0.000000e+00> : vector<8x128xf32>
      %42 = vector.multi_reduction <add>, %41, %cst_19 [0] : vector<2x8x128xf32> to vector<8x128xf32>
      %43 = arith.addf %40, %42 : vector<8x128xf32>
      %c0_20 = arith.constant 0 : index
      %c0_21 = arith.constant 0 : index
      %44 = vector.load %arg5[%c0_20, %c0_21] : memref<8x128xf32, #tpu.memory_space<vmem>>, vector<8x128xf32>
      tpu.vector_store %arg5[%c0_20, %c0_21], %43 {strides = array<i32>} : memref<8x128xf32, #tpu.memory_space<vmem>>, vector<8x128xf32>,
      %c0_22 = arith.constant 0 : index
      %c0_23 = arith.constant 0 : index
      %45 = vector.load %arg6[%c0_22, %c0_23] : memref<8x128xf32, #tpu.memory_space<vmem>>, vector<8x128xf32>
      %46 = vector.shape_cast %37 : vector<16x128xf32> to vector<2x8x128xf32>
      %cst_24 = arith.constant dense<0.000000e+00> : vector<8x128xf32>
      %47 = vector.multi_reduction <add>, %46, %cst_24 [0] : vector<2x8x128xf32> to vector<8x128xf32>
      %48 = arith.addf %45, %47 : vector<8x128xf32>
      %c0_25 = arith.constant 0 : index
      %c0_26 = arith.constant 0 : index
      %49 = vector.load %arg6[%c0_25, %c0_26] : memref<8x128xf32, #tpu.memory_space<vmem>>, vector<8x128xf32>
      tpu.vector_store %arg6[%c0_25, %c0_26], %48 {strides = array<i32>} : memref<8x128xf32, #tpu.memory_space<vmem>>, vector<8x128xf32>,
      %c0_27 = arith.constant 0 : index
      %c0_28 = arith.constant 0 : index
      %50 = vector.load %arg7[%c0_27, %c0_28] : memref<8x128xf32, #tpu.memory_space<vmem>>, vector<8x128xf32>
      %51 = vector.shape_cast %39 : vector<16x128xf32> to vector<2x8x128xf32>
      %cst_29 = arith.constant dense<0.000000e+00> : vector<8x128xf32>
      %52 = vector.multi_reduction <add>, %51, %cst_29 [0] : vector<2x8x128xf32> to vector<8x128xf32>
      %53 = arith.addf %50, %52 : vector<8x128xf32>
      %c0_30 = arith.constant 0 : index
      %c0_31 = arith.constant 0 : index
      %54 = vector.load %arg7[%c0_30, %c0_31] : memref<8x128xf32, #tpu.memory_space<vmem>>, vector<8x128xf32>
      tpu.vector_store %arg7[%c0_30, %c0_31], %53 {strides = array<i32>} : memref<8x128xf32, #tpu.memory_space<vmem>>, vector<8x128xf32>,
    } else {
    }
    %c0_i32_10 = arith.constant 0 : i32
    %16 = arith.cmpi eq, %arg1, %c0_i32_10 : i32
    %17 = arith.extui %16 : i1 to i32
    %c0_i32_11 = arith.constant 0 : i32
    %18 = arith.cmpi ne, %17, %c0_i32_11 : i32
    scf.if %18 {
      %c0_12 = arith.constant 0 : index
      %c0_13 = arith.constant 0 : index
      %19 = vector.load %arg5[%c0_12, %c0_13] : memref<8x128xf32, #tpu.memory_space<vmem>>, vector<8x128xf32>
      %20 = vector.shape_cast %19 : vector<8x128xf32> to vector<1x8x128xf32>
      %cst = arith.constant dense<0.000000e+00> : vector<1xf32>
      %21 = vector.multi_reduction <add>, %20, %cst [1, 2] : vector<1x8x128xf32> to vector<1xf32>
      %22 = vector.shape_cast %21 : vector<1xf32> to vector<1x1x1xf32>
      %23 = vector.extract %22[0, 0, 0] : f32 from vector<1x1x1xf32>
      %c0_14 = arith.constant 0 : index
      %c0_15 = arith.constant 0 : index
      %24 = vector.load %arg6[%c0_14, %c0_15] : memref<8x128xf32, #tpu.memory_space<vmem>>, vector<8x128xf32>
      %25 = vector.shape_cast %24 : vector<8x128xf32> to vector<1x8x128xf32>
      %cst_16 = arith.constant dense<0.000000e+00> : vector<1xf32>
      %26 = vector.multi_reduction <add>, %25, %cst_16 [1, 2] : vector<1x8x128xf32> to vector<1xf32>
      %27 = vector.shape_cast %26 : vector<1xf32> to vector<1x1x1xf32>
      %28 = vector.extract %27[0, 0, 0] : f32 from vector<1x1x1xf32>
      %cst_17 = arith.constant 2.71828175 : f32
      %29 = arith.mulf %28, %cst_17 : f32
      %c0_18 = arith.constant 0 : index
      %c0_19 = arith.constant 0 : index
      %30 = vector.load %arg7[%c0_18, %c0_19] : memref<8x128xf32, #tpu.memory_space<vmem>>, vector<8x128xf32>
      %31 = vector.shape_cast %30 : vector<8x128xf32> to vector<1x8x128xf32>
      %cst_20 = arith.constant dense<0.000000e+00> : vector<1xf32>
      %32 = vector.multi_reduction <add>, %31, %cst_20 [1, 2] : vector<1x8x128xf32> to vector<1xf32>
      %33 = vector.shape_cast %32 : vector<1xf32> to vector<1x1x1xf32>
      %34 = vector.extract %33[0, 0, 0] : f32 from vector<1x1x1xf32>
      %35 = tpu.iota {dimensions = array<i32: 2>} : vector<1x8x128xi32>
      %c0_i32_21 = arith.constant 0 : i32
      %36 = vector.broadcast %c0_i32_21 : i32 to vector<1x8x128xi32>
      %37 = arith.cmpi eq, %35, %36 : vector<1x8x128xi32>
      %c1_i32_22 = arith.constant 1 : i32
      %38 = vector.broadcast %c1_i32_22 : i32 to vector<1x8x128xi32>
      %39 = arith.cmpi eq, %35, %38 : vector<1x8x128xi32>
      %c2_i32 = arith.constant 2 : i32
      %40 = vector.broadcast %c2_i32 : i32 to vector<1x8x128xi32>
      %41 = arith.cmpi eq, %35, %40 : vector<1x8x128xi32>
      %cst_23 = arith.constant 0.000000e+00 : f32
      %42 = vector.broadcast %34 : f32 to vector<1x8x128xf32>
      %43 = vector.broadcast %cst_23 : f32 to vector<1x8x128xf32>
      %44 = arith.select %41, %42, %43 : vector<1x8x128xi1>, vector<1x8x128xf32>
      %45 = vector.broadcast %29 : f32 to vector<1x8x128xf32>
      %46 = arith.select %39, %45, %44 : vector<1x8x128xi1>, vector<1x8x128xf32>
      %47 = vector.broadcast %23 : f32 to vector<1x8x128xf32>
      %48 = arith.select %37, %47, %46 : vector<1x8x128xi1>, vector<1x8x128xf32>
      %c0_24 = arith.constant 0 : index
      %c0_25 = arith.constant 0 : index
      %c0_26 = arith.constant 0 : index
      %49 = vector.load %arg4[%c0_24, %c0_25, %c0_26] : memref<1x8x128xf32, #tpu.memory_space<vmem>>, vector<1x8x128xf32>
      tpu.vector_store %arg4[%c0_24, %c0_25, %c0_26], %48 {strides = array<i32>} : memref<1x8x128xf32, #tpu.memory_space<vmem>>, vector<1x8x128xf32>,
    } else {
    }
    return
  }
  func.func @transform_0(%arg0: i32, %arg1: i32) -> (i32, i32) {
    %c1_i32 = arith.constant 1 : i32
    %0 = arith.muli %arg0, %c1_i32 : i32
    %1 = arith.addi %0, %arg1 : i32
    %c0_i32 = arith.constant 0 : i32
    %2 = arith.minsi %1, %c0_i32 : i32
    %c0_i32_0 = arith.constant 0 : i32
    %c0_i32_1 = arith.constant 0 : i32
    return %2, %c0_i32_0 : i32, i32
  }
  func.func @transform_1(%arg0: i32, %arg1: i32) -> (i32, i32) {
    %c1_i32 = arith.constant 1 : i32
    %0 = arith.muli %arg0, %c1_i32 : i32
    %1 = arith.addi %0, %arg1 : i32
    %c0_i32 = arith.constant 0 : i32
    %2 = arith.minsi %1, %c0_i32 : i32
    %c0_i32_0 = arith.constant 0 : i32
    %c0_i32_1 = arith.constant 0 : i32
    return %2, %c0_i32_0 : i32, i32
  }
  func.func @transform_2(%arg0: i32, %arg1: i32) -> (i32, i32, i32) {
    %c0_i32 = arith.constant 0 : i32
    %c0_i32_0 = arith.constant 0 : i32
    %c0_i32_1 = arith.constant 0 : i32
    return %arg0, %c0_i32, %c0_i32_0 : i32, i32, i32
  }
}

</mosaic_0001>

<llo_original>
// kernel: tpu_custom_call.1
$region0: #{tpu_custom_call.1}
  #allocation0 [shape = 'u32[]', space=smem, size = 0x4, offset = 0x4, fixed_abs, tag = 'smem constant byte address 0x4 - core index']
  #allocation1 [shape = 'u32[144,128]{1,0:T(1,128)}', space=vmem, size = 0x12000, scoped, tag = 'internal scratch']
  #allocation2 [shape = 'f32[8,128]{1,0:T(8,128)}', space=vmem, size = 0x1000, scoped, tag = 'scratch operand']
  #allocation3 [shape = 'f32[8,128]{1,0:T(8,128)}', space=vmem, size = 0x1000, scoped, tag = 'scratch operand']
  #allocation4 [shape = 'f32[8,128]{1,0:T(8,128)}', space=vmem, size = 0x1000, scoped, tag = 'scratch operand']
  %s0 = inlined_call_operand.hbm [shape: f32[16,128], index: 0, kind: input, shape index: {}]
  %s1 = inlined_call_operand.hbm [shape: f32[16,128], index: 1, kind: input, shape index: {}]
  %s2 = inlined_call_operand.hbm [shape: f32[1,8,128], index: 2, kind: output, shape index: {}]
  %s3 = sld [smem:[#allocation0]]
  $region42: #{tpu_custom_call.1} parent=0
    _
  %s5 = ssub.s32 1, %s3
  %s6 = scalar_select 0, %s5, %s3
  $region1: #{tpu_custom_call.1} parent=0
    #allocation5 [shape = 'u8[8192]{0}', space=vmem, size = 0x2000, scoped, tag = 'input window, operand 0, single buffered']
    #allocation6 [shape = 's32[1]{0}', space=sflag, size = 0x4, scoped, tag = 'scoped memory for tpu_custom_call.1']
    #allocation7 [shape = 's32[1]{0}', space=sflag, size = 0x4, scoped, tag = 'scoped memory for tpu_custom_call.1']
    #allocation8 [shape = 'u8[8192]{0}', space=vmem, size = 0x2000, scoped, tag = 'input window, operand 1, single buffered']
    #allocation9 [shape = 's32[1]{0}', space=sflag, size = 0x4, scoped, tag = 'scoped memory for tpu_custom_call.1']
    #allocation10 [shape = 'u8[4096]{0}', space=vmem, size = 0x1000, scoped, tag = 'output window, operand 0, single buffered']
    %7 = vsyncpa [#allocation6], 0
    %8 = vsyncpa [#allocation9], 0
    %9 = vsyncpa [#allocation7], 0
    // Predicated region
    $region2: #{tpu_custom_call.1} parent=1 // pred_check
      _
    $region3: #{tpu_custom_call.1} parent=1 // pred_check_branch
      %11 = sbr.rel (0) target = $region5
    $region4: #{tpu_custom_call.1} parent=1 // pred_region
      %s12 = sadd.s32 0, 0
      %p13 = scmp.lt.s32.totalorder %s12, 0
      %s14 = scalar_select %p13, %s12, 0
      %s15 = smul.u32 2, %s14
      %s17 = ssub.s32 256, 256
      %18 = vsyncadd [#allocation6], %s17
      %s19 = smul.addr %s15, 128
      %s20 = scalar_lea.hbm %s0, %s19
      %s21 = sshll.u32 [#allocation5], 4
      %s22 = int_to_ptr.vmem [resolvable:$true] %s21
      %27 = dma.hbm_to_vmem [thread:$0]  %s20, 256, %s22, [#allocation6], 128, 128, 8
    $region5: #{tpu_custom_call.1} parent=1 // pred_fallthru
      _
    // Predicated region
    $region6: #{tpu_custom_call.1} parent=1 // pred_check
      _
    $region7: #{tpu_custom_call.1} parent=1 // pred_check_branch
      %29 = sbr.rel (0) target = $region9
    $region8: #{tpu_custom_call.1} parent=1 // pred_region
      %s30 = sadd.s32 0, 0
      %p31 = scmp.lt.s32.totalorder %s30, 0
      %s32 = scalar_select %p31, %s30, 0
      %s33 = smul.u32 2, %s32
      %s35 = ssub.s32 256, 256
      %36 = vsyncadd [#allocation9], %s35
      %s37 = smul.addr %s33, 128
      %s38 = scalar_lea.hbm %s1, %s37
      %s39 = sshll.u32 [#allocation8], 4
      %s40 = int_to_ptr.vmem [resolvable:$true] %s39
      %45 = dma.hbm_to_vmem [thread:$0]  %s38, 256, %s40, [#allocation9], 128, 128, 8
    $region9: #{tpu_custom_call.1} parent=1 // pred_fallthru
      _
    // Predicated region
    $region10: #{tpu_custom_call.1} parent=1 // pred_check
      _
    $region11: #{tpu_custom_call.1} parent=1 // pred_check_branch
      %47 = sbr.rel (0) target = $region13
    $region12: #{tpu_custom_call.1} parent=1 // pred_region
      %48 = dma.done [#allocation6], 256
    $region13: #{tpu_custom_call.1} parent=1 // pred_fallthru
      _
    // Predicated region
    $region14: #{tpu_custom_call.1} parent=1 // pred_check
      _
    $region15: #{tpu_custom_call.1} parent=1 // pred_check_branch
      %50 = sbr.rel (0) target = $region17
    $region16: #{tpu_custom_call.1} parent=1 // pred_region
      %51 = dma.done [#allocation9], 256
    $region17: #{tpu_custom_call.1} parent=1 // pred_fallthru
      _
    %s52 = sadd.s32 0, 0
    %p53 = scmp.lt.s32.totalorder %s52, 0
    %s54 = scalar_select %p53, %s52, 0
    %s55 = smul.u32 2, %s54
    %s56 = sadd.s32 0, 0
    %p57 = scmp.lt.s32.totalorder %s56, 0
    %s58 = scalar_select %p57, %s56, 0
    %s59 = smul.u32 2, %s58
    %p60 = scmp.eq.s32.totalorder 0, 0
    // Predicated region
    $region18: #{tpu_custom_call.1} parent=1 // pred_check
      %p61 = pneg %p60
    $region19: #{tpu_custom_call.1} parent=1 // pred_check_branch
      %63 = sbr.rel (%p61) target = $region21
    $region20: #{tpu_custom_call.1} parent=1 // pred_region
      %64 = vst [vmem:[#allocation2] sm:$0xff] 0.0
      %65 = vst [vmem:[#allocation3] sm:$0xff] 0.0
      %66 = vst [vmem:[#allocation4] sm:$0xff] 0.0
    $region21: #{tpu_custom_call.1} parent=1 // pred_fallthru
      _
    %v67 = vld [vmem:[#allocation5] sm:$0xff]
    %v68 = vld [vmem:[#allocation5 + $0x8] sm:$0xff]
    %v69 = vld [vmem:[#allocation8] sm:$0xff]
    %v70 = vld [vmem:[#allocation8 + $0x8] sm:$0xff]
    %s71 = sadd.s32 0, 0
    %s72 = smul.u32 %s71, 16
    %s73 = sadd.s32 %s72, 16
    %p74 = scmp.le.s32.totalorder %s73, 16
    // Predicated region
    $region22: #{tpu_custom_call.1} parent=1 // pred_check
      %p75 = pneg %p74
    $region23: #{tpu_custom_call.1} parent=1 // pred_check_branch
      %77 = sbr.rel (%p75) target = $region25
    $region24: #{tpu_custom_call.1} parent=1 // pred_region
      %v78 = vsub.f32 %v67, %v69
      %v79 = vsub.f32 %v68, %v70
      %v80 = vmul.f32 %v78, %v78
      %v81 = vmul.f32 %v79, %v79
      %v82 = vsub.f32 %v67, 100.0
      %v83 = vsub.f32 %v68, 100.0
      %v84 = vmul.f32 %v82, 0.06666667
      %v85 = vmul.f32 %v83, 0.06666667
      %v86 = vand.u32 2147483647, %v84
      %v87 = vand.u32 2147483647, %v85
      %v88 = vmul.f32 %v86, 1.442695
      %v89 = vpow.pop %v88
      %v90 = vmul.f32 %v87, 1.442695
      %v91 = vpow.pop %v90
      %v92 = vand.u32 2147483647, %v78
      %v93 = vand.u32 2147483647, %v79
      %v94 = vrcp.pop %v67
      %v95 = vmul.f32 %v92, %v94
      %v96 = vrcp.pop %v68
      %v97 = vmul.f32 %v93, %v96
      %v98 = vld [vmem:[#allocation2] sm:$0xff]
      %v99 = vadd.f32 %v80, %v81
      %v100 = vadd.f32 %v98, %v99
      %101 = vst [vmem:[#allocation2] sm:$0xff] %v100
      %v102 = vld [vmem:[#allocation3] sm:$0xff]
      %v103 = vadd.f32 %v89, %v91
      %v104 = vadd.f32 %v102, %v103
      %105 = vst [vmem:[#allocation3] sm:$0xff] %v104
      %v106 = vld [vmem:[#allocation4] sm:$0xff]
      %v107 = vadd.f32 %v95, %v97
      %v108 = vadd.f32 %v106, %v107
      %109 = vst [vmem:[#allocation4] sm:$0xff] %v108
    $region25: #{tpu_custom_call.1} parent=1 // pred_fallthru
      _
    %p110 = scmp.gt.s32.totalorder %s73, 16
    // Predicated region
    $region26: #{tpu_custom_call.1} parent=1 // pred_check
      %p111 = pneg %p110
    $region27: #{tpu_custom_call.1} parent=1 // pred_check_branch
      %113 = sbr.rel (%p111) target = $region29
    $region28: #{tpu_custom_call.1} parent=1 // pred_region
      %v114 = vsub.f32 %v67, %v69
      %v115 = vsub.f32 %v68, %v70
      %v116 = vmul.f32 %v114, %v114
      %v117 = vmul.f32 %v115, %v115
      %v118 = vsub.f32 %v67, 100.0
      %v119 = vsub.f32 %v68, 100.0
      %v120 = vmul.f32 %v118, 0.06666667
      %v121 = vmul.f32 %v119, 0.06666667
      %v122 = vand.u32 2147483647, %v120
      %v123 = vand.u32 2147483647, %v121
      %v124 = vmul.f32 %v122, 1.442695
      %v125 = vpow.pop %v124
      %v126 = vmul.f32 %v123, 1.442695
      %v127 = vpow.pop %v126
      %v128 = vand.u32 2147483647, %v114
      %v129 = vand.u32 2147483647, %v115
      %v130 = vrcp.pop %v67
      %v131 = vmul.f32 %v128, %v130
      %v132 = vrcp.pop %v68
      %v133 = vmul.f32 %v129, %v132
      %v134 = vlaneseq
      %v135 = vshrl.u32 %v134, 7
      %v136 = vadd.s32 %v135, 8
      %v137 = vstv %s72
      %v138 = vadd.s32 %v137, %v135
      %v139 = vadd.s32 %v137, %v136
      %vm140 = vcmp.lt.s32.totalorder %v138, 16
      %vm141 = vcmp.lt.s32.totalorder %v139, 16
      %v142 = vsel %vm140, %v116, 0.0
      %v143 = vsel %vm141, %v117, 0.0
      %v144 = vsel %vm140, %v125, 0.0
      %v145 = vsel %vm141, %v127, 0.0
      %v146 = vsel %vm140, %v131, 0.0
      %v147 = vsel %vm141, %v133, 0.0
      %v148 = vld [vmem:[#allocation2] sm:$0xff]
      %v149 = vadd.f32 %v142, %v143
      %v150 = vadd.f32 %v148, %v149
      %151 = vst [vmem:[#allocation2] sm:$0xff] %v150
      %v152 = vld [vmem:[#allocation3] sm:$0xff]
      %v153 = vadd.f32 %v144, %v145
      %v154 = vadd.f32 %v152, %v153
      %155 = vst [vmem:[#allocation3] sm:$0xff] %v154
      %v156 = vld [vmem:[#allocation4] sm:$0xff]
      %v157 = vadd.f32 %v146, %v147
      %v158 = vadd.f32 %v156, %v157
      %159 = vst [vmem:[#allocation4] sm:$0xff] %v158
    $region29: #{tpu_custom_call.1} parent=1 // pred_fallthru
      _
    // Predicated region
    $region30: #{tpu_custom_call.1} parent=1 // pred_check
      %p160 = pneg %p60
    $region31: #{tpu_custom_call.1} parent=1 // pred_check_branch
      %162 = sbr.rel (%p160) target = $region33
    $region32: #{tpu_custom_call.1} parent=1 // pred_region
      %v163 = vld [vmem:[#allocation2] sm:$0xff]
      %164 = vadd.xlane.f32.xlu0 %v163
      %v165 = vpop.xlane.xlu0 %164
      %v166 = vrot.slane %v165, 4
      %v167 = vadd.f32 %v165, %v166
      %v168 = vrot.slane %v167, 2
      %v169 = vadd.f32 %v167, %v168
      %v170 = vrot.slane %v169, 1
      %v171 = vadd.f32 %v169, %v170
      %s172 = vtos %v171
      %v173 = vld [vmem:[#allocation3] sm:$0xff]
      %174 = vadd.xlane.f32.xlu0 %v173
      %v175 = vpop.xlane.xlu0 %174
      %v176 = vrot.slane %v175, 4
      %v177 = vadd.f32 %v175, %v176
      %v178 = vrot.slane %v177, 2
      %v179 = vadd.f32 %v177, %v178
      %v180 = vrot.slane %v179, 1
      %v181 = vadd.f32 %v179, %v180
      %s182 = vtos %v181
      %s183 = smul.f32 %s182, 2.7182817
      %v184 = vld [vmem:[#allocation4] sm:$0xff]
      %185 = vadd.xlane.f32.xlu0 %v184
      %v186 = vpop.xlane.xlu0 %185
      %v187 = vrot.slane %v186, 4
      %v188 = vadd.f32 %v186, %v187
      %v189 = vrot.slane %v188, 2
      %v190 = vadd.f32 %v188, %v189
      %v191 = vrot.slane %v190, 1
      %v192 = vadd.f32 %v190, %v191
      %s193 = vtos %v192
      %v194 = vlaneseq
      %v195 = vand.u32 %v194, 127
      %vm196 = vcmp.eq.s32.totalorder %v195, 0
      %vm197 = vcmp.eq.s32.totalorder %v195, 1
      %vm198 = vcmp.eq.s32.totalorder %v195, 2
      %v199 = vstv %s193
      %v200 = vsel %vm198, %v199, 0.0
      %v201 = vstv %s183
      %v202 = vsel %vm197, %v201, %v200
      %v203 = vstv %s172
      %v204 = vsel %vm196, %v203, %v202
      %205 = vst [vmem:[#allocation10] sm:$0xff] %v204
    $region33: #{tpu_custom_call.1} parent=1 // pred_fallthru
      _
    // Predicated region
    $region34: #{tpu_custom_call.1} parent=1 // pred_check
      _
    $region35: #{tpu_custom_call.1} parent=1 // pred_check_branch
      %207 = sbr.rel (0) target = $region37
    $region36: #{tpu_custom_call.1} parent=1 // pred_region
      %s209 = ssub.s32 128, 128
      %210 = vsyncadd [#allocation7], %s209
      %s212 = sshll.u32 [#allocation10], 4
      %s213 = int_to_ptr.vmem [resolvable:$true] %s212
      %215 = dma.vmem_to_hbm [thread:$0]  %s213, 128, %s2, [#allocation7]
    $region37: #{tpu_custom_call.1} parent=1 // pred_fallthru
      _
    // Predicated region
    $region38: #{tpu_custom_call.1} parent=1 // pred_check
      _
    $region39: #{tpu_custom_call.1} parent=1 // pred_check_branch
      %217 = sbr.rel (0) target = $region41
    $region40: #{tpu_custom_call.1} parent=1 // pred_region
      %218 = dma.done [#allocation7], 128
    $region41: #{tpu_custom_call.1} parent=1 // pred_fallthru
      _
    %219 = vsyncpa [#allocation6], 1
    %220 = vsyncpa [#allocation9], 1
    %221 = vsyncpa [#allocation7], 1

</llo_original>
